<compile_context>
chip_gen: v5e
topology: v5e:2x2
jax: 0.10.0
libtpu: 0.0.40
codegen_flags: <defaults>
</compile_context>

<pallas_src>
import math
import functools

import jax
import jax.numpy as jnp
from jax import lax
from jax.experimental import pallas as pl
from jax.experimental.pallas import tpu as pltpu  # noqa: F401  (no grid/scratch/DMA needed in this fused kernel)

# ---- model hyperparameters (small, consistent with the module) ----
D_MODEL = 32
D_FF = 64
NUM_HEADS = 4
NUM_LAYERS = 2          # stacked EncoderBlocks fused into one kernel (1 == the spec'd module)
BATCH = 2
SEQ = 8
EPS = 1e-5              # nn.LayerNorm default eps

# rows of the packed vector slab
_G1, _BE1, _B1, _B2, _G2, _BE2 = range(6)


def _layernorm(x, gamma, beta):
    mean = jnp.mean(x, axis=-1, keepdims=True)
    var = jnp.mean(jnp.square(x - mean), axis=-1, keepdims=True)
    return (x - mean) * lax.rsqrt(var + EPS) * gamma + beta


def encoder_kernel(x_ref, vl_ref, w_ref, w2_ref, vec_ref, o_ref, *,
                   num_layers, num_heads, batch, seq, d_model, d_ff):
    B, S, D, H = batch, seq, d_model, num_heads
    dh = D // H
    scale = 1.0 / math.sqrt(dh)

    x = x_ref[...].astype(jnp.float32)                       # (B*S, D), VMEM resident

    # Additive key mask, built once for all layers/heads: 0 for valid keys, -1e6 otherwise.
    # vl_ref is (B, 1, 1) int32, so no in-kernel reshapes are needed.
    col = lax.broadcasted_iota(jnp.int32, (B, 1, S), 2)      # (B, 1, S)
    bias = jnp.where(col < vl_ref[...], 0.0, -1e6).astype(jnp.float32)   # (B, 1, S)

    for l in range(num_layers):                              # static unroll over stacked blocks
        # ---- multi-head self-attention: one fused QKV projection ----
        qkv = jnp.dot(x, w_ref[l, :, 0:3 * D],               # (B*S, 3D)
                      preferred_element_type=jnp.float32)

        attn = jnp.zeros((B * S, D), jnp.float32)
        for h in range(H):                                   # static unroll over heads
            q_h = qkv[:, h * dh:(h + 1) * dh].reshape(B, S, dh)
            k_h = qkv[:, D + h * dh:D + (h + 1) * dh].reshape(B, S, dh)
            v_h = qkv[:, 2 * D + h * dh:2 * D + (h + 1) * dh].reshape(B, S, dh)

            s = jnp.einsum("bqd,bkd->bqk", q_h, k_h,
                           preferred_element_type=jnp.float32) * scale + bias
            s = s - jnp.max(s, axis=-1, keepdims=True)
            p = jnp.exp(s)
            # TODO(synk): pl.reciprocal(..., approx=True) would move this divide to the EUP
            # (free slot, esp. on v5e) but loosens the 1e-4 correctness check; kept exact.
            p = p / jnp.sum(p, axis=-1, keepdims=True)

            o_h = jnp.einsum("bqk,bkd->bqd", p, v_h,
                             preferred_element_type=jnp.float32)          # (B, S, dh)
            # concat(head_outs) @ Wo  ==  sum_h head_h @ Wo[h*dh:(h+1)*dh, :]  (no concat)
            attn = attn + jnp.dot(o_h.reshape(B * S, dh),
                                  w_ref[l, h * dh:(h + 1) * dh, 3 * D:4 * D],
                                  preferred_element_type=jnp.float32)

        g1 = vec_ref[l, _G1:_G1 + 1, 0:D]
        be1 = vec_ref[l, _BE1:_BE1 + 1, 0:D]
        b1 = vec_ref[l, _B1:_B1 + 1, 0:d_ff]
        b2 = vec_ref[l, _B2:_B2 + 1, 0:D]
        g2 = vec_ref[l, _G2:_G2 + 1, 0:D]
        be2 = vec_ref[l, _BE2:_BE2 + 1, 0:D]

        # ---- AddNorm 1 (dropout == identity in eval) ----
        y = _layernorm(x + attn, g1, be1)

        # ---- position-wise FFN ----
        h1 = jnp.maximum(
            jnp.dot(y, w_ref[l, :, 4 * D:4 * D + d_ff],
                    preferred_element_type=jnp.float32) + b1, 0.0)
        ffn = jnp.dot(h1, w2_ref[l], preferred_element_type=jnp.float32) + b2

        # ---- AddNorm 2 ----
        x = _layernorm(y + ffn, g2, be2)

    o_ref[...] = x.astype(o_ref.dtype)


def _pack_params(layer_params, d_model, d_ff):
    """Pack the 13 per-layer tensors into three stacked slabs (fewer, larger DMA streams)."""
    width = max(d_model, d_ff)

    def row(v):
        v = v.reshape(1, -1)
        return jnp.pad(v, ((0, 0), (0, width - v.shape[1])))

    w_slab = jnp.stack([
        jnp.concatenate([p["wq"], p["wk"], p["wv"], p["wo"], p["w1"]], axis=1)
        for p in layer_params])                                    # (L, D, 4D + d_ff)
    w2 = jnp.stack([p["w2"] for p in layer_params])                # (L, d_ff, D)
    vecs = jnp.stack([
        jnp.concatenate([row(p["g1"]), row(p["be1"]), row(p["b1"]),
                         row(p["b2"]), row(p["g2"]), row(p["be2"])], axis=0)
        for p in layer_params])                                    # (L, 6, width)
    return w_slab, w2, vecs


def encoder_pallas(x, valid_lens, layer_params, num_heads):
    """N stacked EncoderBlock forwards fused into a single grid-less pallas_call."""
    B, S, D = x.shape
    d_ff = layer_params[0]["w1"].shape[1]
    w_slab, w2, vecs = _pack_params(layer_params, D, d_ff)

    kernel = functools.partial(
        encoder_kernel, num_layers=len(layer_params), num_heads=num_heads,
        batch=B, seq=S, d_model=D, d_ff=d_ff)

    out = pl.pallas_call(
        kernel,
        out_shape=jax.ShapeDtypeStruct((B * S, D), jnp.float32),
    )(x.reshape(B * S, D).astype(jnp.float32),
      valid_lens.reshape(B, 1, 1).astype(jnp.int32),
      w_slab, w2, vecs)
    return out.reshape(B, S, D)


def encoder_block_pallas(x, valid_lens, params, num_heads):
    """Single EncoderBlock forward (the module in the spec)."""
    return encoder_pallas(x, valid_lens, [params], num_heads)


# ---------------- pure-JAX reference (for verification) ----------------
def encoder_block_ref(x, valid_lens, p, num_heads):
    B, S, D = x.shape
    dh = D // num_heads

    def split(t):
        return t.reshape(B, S, num_heads, dh).transpose(0, 2, 1, 3)

    q, k, v = x @ p["wq"], x @ p["wk"], x @ p["wv"]
    qh, kh, vh = split(q), split(k), split(v)
    scores = jnp.einsum("bhqd,bhkd->bhqk", qh, kh) / math.sqrt(dh)
    mask = jnp.arange(S)[None, None, None, :] < valid_lens[:, None, None, None]
    scores = jnp.where(mask, scores, -1e6)
    attn = jax.nn.softmax(scores, axis=-1)
    out = jnp.einsum("bhqk,bhkd->bhqd", attn, vh)
    out = out.transpose(0, 2, 1, 3).reshape(B, S, D)
    attn_out = out @ p["wo"]

    def ln(t, g, b):
        m = t.mean(-1, keepdims=True)
        var = ((t - m) ** 2).mean(-1, keepdims=True)
        return (t - m) / jnp.sqrt(var + EPS) * g + b

    y = ln(x + attn_out, p["g1"], p["be1"])
    ffn = jnp.maximum(y @ p["w1"] + p["b1"], 0.0) @ p["w2"] + p["b2"]
    return ln(y + ffn, p["g2"], p["be2"])


def encoder_ref(x, valid_lens, layer_params, num_heads):
    for p in layer_params:
        x = encoder_block_ref(x, valid_lens, p, num_heads)
    return x


# ---------------- deterministic parameter init ----------------
# NOTE: weights are stored (in, out) for `x @ W`; PyTorch nn.Linear stores (out, in)
# and real checkpoints must be transposed before use.
def init_layer_params(key, d_model, d_ff):
    ks = jax.random.split(key, 6)
    s = 0.05
    return {
        "wq": s * jax.random.normal(ks[0], (d_model, d_model), jnp.float32),
        "wk": s * jax.random.normal(ks[1], (d_model, d_model), jnp.float32),
        "wv": s * jax.random.normal(ks[2], (d_model, d_model), jnp.float32),
        "wo": s * jax.random.normal(ks[3], (d_model, d_model), jnp.float32),
        "g1": jnp.ones((1, d_model), jnp.float32),
        "be1": jnp.zeros((1, d_model), jnp.float32),
        "w1": s * jax.random.normal(ks[4], (d_model, d_ff), jnp.float32),
        "b1": jnp.zeros((1, d_ff), jnp.float32),
        "w2": s * jax.random.normal(ks[5], (d_ff, d_model), jnp.float32),
        "b2": jnp.zeros((1, d_model), jnp.float32),
        "g2": jnp.ones((1, d_model), jnp.float32),
        "be2": jnp.zeros((1, d_model), jnp.float32),
    }


if __name__ == "__main__":
    root = jax.random.PRNGKey(0)
    k_x, *k_layers = jax.random.split(root, NUM_LAYERS + 1)

    x = jax.random.normal(k_x, (BATCH, SEQ, D_MODEL), jnp.float32)
    valid_lens = jnp.array([5, 8], dtype=jnp.int32)          # one valid length per batch row
    layer_params = [init_layer_params(k, D_MODEL, D_FF) for k in k_layers]

    # single EncoderBlock (the spec'd module)
    out1 = jax.block_until_ready(
        encoder_block_pallas(x, valid_lens, layer_params[0], NUM_HEADS))
    ref1 = encoder_block_ref(x, valid_lens, layer_params[0], NUM_HEADS)
    assert out1.shape == (BATCH, SEQ, D_MODEL)
    assert jnp.allclose(out1, ref1, rtol=1e-4, atol=1e-4), "EncoderBlock mismatch vs reference"

    # 2 stacked EncoderBlocks fused into the same single kernel launch
    out2 = jax.block_until_ready(
        encoder_pallas(x, valid_lens, layer_params, NUM_HEADS))
    ref2 = encoder_ref(x, valid_lens, layer_params, NUM_HEADS)
    assert jnp.allclose(out2, ref2, rtol=1e-4, atol=1e-4), "stacked Encoder mismatch vs reference"

    print("KERNEL_OK")
</pallas_src>

<mosaic_0001>
module attributes {stable_mosaic.version = 11 : i64} {
  func.func @encoder_kernel(%arg0: memref<16x32xf32, #tpu.memory_space<vmem>>, %arg1: memref<2x1x1xi32, #tpu.memory_space<vmem>>, %arg2: memref<1x32x192xf32, #tpu.memory_space<vmem>>, %arg3: memref<1x64x32xf32, #tpu.memory_space<vmem>>, %arg4: memref<1x6x64xf32, #tpu.memory_space<vmem>>, %arg5: memref<16x32xf32, #tpu.memory_space<vmem>>) attributes {dimension_semantics = [], scalar_prefetch = 0 : i64, scratch_operands = 0 : i64, tpu.core_type = #tpu.core_type<tc>} {
    %c0 = arith.constant 0 : index
    %c0_0 = arith.constant 0 : index
    %0 = vector.load %arg0[%c0, %c0_0] : memref<16x32xf32, #tpu.memory_space<vmem>>, vector<16x32xf32>
    %1 = tpu.iota {dimensions = array<i32: 2>} : vector<2x1x8xi32>
    %c0_1 = arith.constant 0 : index
    %c0_2 = arith.constant 0 : index
    %c0_3 = arith.constant 0 : index
    %2 = vector.load %arg1[%c0_1, %c0_2, %c0_3] : memref<2x1x1xi32, #tpu.memory_space<vmem>>, vector<2x1x1xi32>
    %3 = vector.broadcast %2 : vector<2x1x1xi32> to vector<2x1x8xi32>
    %4 = arith.cmpi slt, %1, %3 : vector<2x1x8xi32>
    %cst = arith.constant 0.000000e+00 : f32
    %cst_4 = arith.constant -1.000000e+06 : f32
    %5 = vector.broadcast %cst : f32 to vector<2x1x8xf32>
    %6 = vector.broadcast %cst_4 : f32 to vector<2x1x8xf32>
    %7 = arith.select %4, %5, %6 : vector<2x1x8xi1>, vector<2x1x8xf32>
    %c0_5 = arith.constant 0 : index
    %c0_6 = arith.constant 0 : index
    %c0_7 = arith.constant 0 : index
    %8 = vector.load %arg2[%c0_5, %c0_6, %c0_7] : memref<1x32x192xf32, #tpu.memory_space<vmem>>, vector<1x32x96xf32>
    %9 = vector.shape_cast %8 : vector<1x32x96xf32> to vector<32x96xf32>
    %cst_8 = arith.constant dense<0.000000e+00> : vector<16x96xf32>
    %10 = tpu.matmul %0, %9, %cst_8 {dimension_numbers = #tpu.dot_dimension_numbers<[1], [0], [0], [1], [0, 0, 1, 1], [], []>} : vector<16x32xf32>, vector<32x96xf32>, vector<16x96xf32> -> vector<16x96xf32>
    %cst_9 = arith.constant 0.000000e+00 : f32
    %11 = vector.broadcast %cst_9 : f32 to vector<16x32xf32>
    %12 = vector.extract_strided_slice %10 {offsets = [0, 0], sizes = [16, 8], strides = [1, 1]} : vector<16x96xf32> to vector<16x8xf32>
    %13 = vector.shape_cast %12 : vector<16x8xf32> to vector<2x8x8xf32>
    %14 = vector.extract_strided_slice %10 {offsets = [0, 32], sizes = [16, 8], strides = [1, 1]} : vector<16x96xf32> to vector<16x8xf32>
    %15 = vector.shape_cast %14 : vector<16x8xf32> to vector<2x8x8xf32>
    %16 = vector.extract_strided_slice %10 {offsets = [0, 64], sizes = [16, 8], strides = [1, 1]} : vector<16x96xf32> to vector<16x8xf32>
    %17 = vector.shape_cast %16 : vector<16x8xf32> to vector<2x8x8xf32>
    "tpu.trace_start"() <{level = 10 : i32, message = "bqd,bkd->bqk"}> : () -> ()
    %cst_10 = arith.constant dense<0.000000e+00> : vector<2x8x8xf32>
    %18 = tpu.matmul %13, %15, %cst_10 {dimension_numbers = #tpu.dot_dimension_numbers<[2], [2], [1], [1], [0, 0, 0, 1, 1, 1], [0], [0]>} : vector<2x8x8xf32>, vector<2x8x8xf32>, vector<2x8x8xf32> -> vector<2x8x8xf32>
    "tpu.trace_stop"() : () -> ()
    %cst_11 = arith.constant 0.353553385 : f32
    %19 = vector.broadcast %cst_11 : f32 to vector<2x8x8xf32>
    %20 = arith.mulf %18, %19 : vector<2x8x8xf32>
    %21 = vector.broadcast %7 : vector<2x1x8xf32> to vector<2x8x8xf32>
    %22 = arith.addf %20, %21 : vector<2x8x8xf32>
    %cst_12 = arith.constant dense<0xFF800000> : vector<2x8xf32>
    %23 = vector.multi_reduction <maximumf>, %22, %cst_12 [2] : vector<2x8x8xf32> to vector<2x8xf32>
    %24 = vector.shape_cast %23 : vector<2x8xf32> to vector<2x8x1xf32>
    %25 = vector.broadcast %24 : vector<2x8x1xf32> to vector<2x8x8xf32>
    %26 = arith.subf %22, %25 : vector<2x8x8xf32>
    %27 = math.exp %26 : vector<2x8x8xf32>
    %cst_13 = arith.constant dense<0.000000e+00> : vector<2x8xf32>
    %28 = vector.multi_reduction <add>, %27, %cst_13 [2] : vector<2x8x8xf32> to vector<2x8xf32>
    %29 = vector.shape_cast %28 : vector<2x8xf32> to vector<2x8x1xf32>
    %30 = vector.broadcast %29 : vector<2x8x1xf32> to vector<2x8x8xf32>
    %31 = arith.divf %27, %30 : vector<2x8x8xf32>
    "tpu.trace_start"() <{level = 10 : i32, message = "bqk,bkd->bqd"}> : () -> ()
    %cst_14 = arith.constant dense<0.000000e+00> : vector<2x8x8xf32>
    %32 = tpu.matmul %31, %17, %cst_14 {dimension_numbers = #tpu.dot_dimension_numbers<[2], [1], [1], [2], [0, 0, 0, 1, 1, 2], [0], [0]>} : vector<2x8x8xf32>, vector<2x8x8xf32>, vector<2x8x8xf32> -> vector<2x8x8xf32>
    "tpu.trace_stop"() : () -> ()
    %33 = vector.shape_cast %32 : vector<2x8x8xf32> to vector<16x8xf32>
    %c0_15 = arith.constant 0 : index
    %c0_16 = arith.constant 0 : index
    %c96 = arith.constant 96 : index
    %34 = vector.load %arg2[%c0_15, %c0_16, %c96] : memref<1x32x192xf32, #tpu.memory_space<vmem>>, vector<1x8x32xf32>
    %35 = vector.shape_cast %34 : vector<1x8x32xf32> to vector<8x32xf32>
    %cst_17 = arith.constant dense<0.000000e+00> : vector<16x32xf32>
    %36 = tpu.matmul %33, %35, %cst_17 {dimension_numbers = #tpu.dot_dimension_numbers<[1], [0], [0], [1], [0, 0, 1, 1], [], []>} : vector<16x8xf32>, vector<8x32xf32>, vector<16x32xf32> -> vector<16x32xf32>
    %37 = arith.addf %11, %36 : vector<16x32xf32>
    %38 = vector.extract_strided_slice %10 {offsets = [0, 8], sizes = [16, 8], strides = [1, 1]} : vector<16x96xf32> to vector<16x8xf32>
    %39 = vector.shape_cast %38 : vector<16x8xf32> to vector<2x8x8xf32>
    %40 = vector.extract_strided_slice %10 {offsets = [0, 40], sizes = [16, 8], strides = [1, 1]} : vector<16x96xf32> to vector<16x8xf32>
    %41 = vector.shape_cast %40 : vector<16x8xf32> to vector<2x8x8xf32>
    %42 = vector.extract_strided_slice %10 {offsets = [0, 72], sizes = [16, 8], strides = [1, 1]} : vector<16x96xf32> to vector<16x8xf32>
    %43 = vector.shape_cast %42 : vector<16x8xf32> to vector<2x8x8xf32>
    "tpu.trace_start"() <{level = 10 : i32, message = "bqd,bkd->bqk"}> : () -> ()
    %cst_18 = arith.constant dense<0.000000e+00> : vector<2x8x8xf32>
    %44 = tpu.matmul %39, %41, %cst_18 {dimension_numbers = #tpu.dot_dimension_numbers<[2], [2], [1], [1], [0, 0, 0, 1, 1, 1], [0], [0]>} : vector<2x8x8xf32>, vector<2x8x8xf32>, vector<2x8x8xf32> -> vector<2x8x8xf32>
    "tpu.trace_stop"() : () -> ()
    %cst_19 = arith.constant 0.353553385 : f32
    %45 = vector.broadcast %cst_19 : f32 to vector<2x8x8xf32>
    %46 = arith.mulf %44, %45 : vector<2x8x8xf32>
    %47 = vector.broadcast %7 : vector<2x1x8xf32> to vector<2x8x8xf32>
    %48 = arith.addf %46, %47 : vector<2x8x8xf32>
    %cst_20 = arith.constant dense<0xFF800000> : vector<2x8xf32>
    %49 = vector.multi_reduction <maximumf>, %48, %cst_20 [2] : vector<2x8x8xf32> to vector<2x8xf32>
    %50 = vector.shape_cast %49 : vector<2x8xf32> to vector<2x8x1xf32>
    %51 = vector.broadcast %50 : vector<2x8x1xf32> to vector<2x8x8xf32>
    %52 = arith.subf %48, %51 : vector<2x8x8xf32>
    %53 = math.exp %52 : vector<2x8x8xf32>
    %cst_21 = arith.constant dense<0.000000e+00> : vector<2x8xf32>
    %54 = vector.multi_reduction <add>, %53, %cst_21 [2] : vector<2x8x8xf32> to vector<2x8xf32>
    %55 = vector.shape_cast %54 : vector<2x8xf32> to vector<2x8x1xf32>
    %56 = vector.broadcast %55 : vector<2x8x1xf32> to vector<2x8x8xf32>
    %57 = arith.divf %53, %56 : vector<2x8x8xf32>
    "tpu.trace_start"() <{level = 10 : i32, message = "bqk,bkd->bqd"}> : () -> ()
    %cst_22 = arith.constant dense<0.000000e+00> : vector<2x8x8xf32>
    %58 = tpu.matmul %57, %43, %cst_22 {dimension_numbers = #tpu.dot_dimension_numbers<[2], [1], [1], [2], [0, 0, 0, 1, 1, 2], [0], [0]>} : vector<2x8x8xf32>, vector<2x8x8xf32>, vector<2x8x8xf32> -> vector<2x8x8xf32>
    "tpu.trace_stop"() : () -> ()
    %59 = vector.shape_cast %58 : vector<2x8x8xf32> to vector<16x8xf32>
    %c0_23 = arith.constant 0 : index
    %c8 = arith.constant 8 : index
    %c96_24 = arith.constant 96 : index
    %60 = vector.load %arg2[%c0_23, %c8, %c96_24] : memref<1x32x192xf32, #tpu.memory_space<vmem>>, vector<1x8x32xf32>
    %61 = vector.shape_cast %60 : vector<1x8x32xf32> to vector<8x32xf32>
    %cst_25 = arith.constant dense<0.000000e+00> : vector<16x32xf32>
    %62 = tpu.matmul %59, %61, %cst_25 {dimension_numbers = #tpu.dot_dimension_numbers<[1], [0], [0], [1], [0, 0, 1, 1], [], []>} : vector<16x8xf32>, vector<8x32xf32>, vector<16x32xf32> -> vector<16x32xf32>
    %63 = arith.addf %37, %62 : vector<16x32xf32>
    %64 = vector.extract_strided_slice %10 {offsets = [0, 16], sizes = [16, 8], strides = [1, 1]} : vector<16x96xf32> to vector<16x8xf32>
    %65 = vector.shape_cast %64 : vector<16x8xf32> to vector<2x8x8xf32>
    %66 = vector.extract_strided_slice %10 {offsets = [0, 48], sizes = [16, 8], strides = [1, 1]} : vector<16x96xf32> to vector<16x8xf32>
    %67 = vector.shape_cast %66 : vector<16x8xf32> to vector<2x8x8xf32>
    %68 = vector.extract_strided_slice %10 {offsets = [0, 80], sizes = [16, 8], strides = [1, 1]} : vector<16x96xf32> to vector<16x8xf32>
    %69 = vector.shape_cast %68 : vector<16x8xf32> to vector<2x8x8xf32>
    "tpu.trace_start"() <{level = 10 : i32, message = "bqd,bkd->bqk"}> : () -> ()
    %cst_26 = arith.constant dense<0.000000e+00> : vector<2x8x8xf32>
    %70 = tpu.matmul %65, %67, %cst_26 {dimension_numbers = #tpu.dot_dimension_numbers<[2], [2], [1], [1], [0, 0, 0, 1, 1, 1], [0], [0]>} : vector<2x8x8xf32>, vector<2x8x8xf32>, vector<2x8x8xf32> -> vector<2x8x8xf32>
    "tpu.trace_stop"() : () -> ()
    %cst_27 = arith.constant 0.353553385 : f32
    %71 = vector.broadcast %cst_27 : f32 to vector<2x8x8xf32>
    %72 = arith.mulf %70, %71 : vector<2x8x8xf32>
    %73 = vector.broadcast %7 : vector<2x1x8xf32> to vector<2x8x8xf32>
    %74 = arith.addf %72, %73 : vector<2x8x8xf32>
    %cst_28 = arith.constant dense<0xFF800000> : vector<2x8xf32>
    %75 = vector.multi_reduction <maximumf>, %74, %cst_28 [2] : vector<2x8x8xf32> to vector<2x8xf32>
    %76 = vector.shape_cast %75 : vector<2x8xf32> to vector<2x8x1xf32>
    %77 = vector.broadcast %76 : vector<2x8x1xf32> to vector<2x8x8xf32>
    %78 = arith.subf %74, %77 : vector<2x8x8xf32>
    %79 = math.exp %78 : vector<2x8x8xf32>
    %cst_29 = arith.constant dense<0.000000e+00> : vector<2x8xf32>
    %80 = vector.multi_reduction <add>, %79, %cst_29 [2] : vector<2x8x8xf32> to vector<2x8xf32>
    %81 = vector.shape_cast %80 : vector<2x8xf32> to vector<2x8x1xf32>
    %82 = vector.broadcast %81 : vector<2x8x1xf32> to vector<2x8x8xf32>
    %83 = arith.divf %79, %82 : vector<2x8x8xf32>
    "tpu.trace_start"() <{level = 10 : i32, message = "bqk,bkd->bqd"}> : () -> ()
    %cst_30 = arith.constant dense<0.000000e+00> : vector<2x8x8xf32>
    %84 = tpu.matmul %83, %69, %cst_30 {dimension_numbers = #tpu.dot_dimension_numbers<[2], [1], [1], [2], [0, 0, 0, 1, 1, 2], [0], [0]>} : vector<2x8x8xf32>, vector<2x8x8xf32>, vector<2x8x8xf32> -> vector<2x8x8xf32>
    "tpu.trace_stop"() : () -> ()
    %85 = vector.shape_cast %84 : vector<2x8x8xf32> to vector<16x8xf32>
    %c0_31 = arith.constant 0 : index
    %c16 = arith.constant 16 : index
    %c96_32 = arith.constant 96 : index
    %86 = vector.load %arg2[%c0_31, %c16, %c96_32] : memref<1x32x192xf32, #tpu.memory_space<vmem>>, vector<1x8x32xf32>
    %87 = vector.shape_cast %86 : vector<1x8x32xf32> to vector<8x32xf32>
    %cst_33 = arith.constant dense<0.000000e+00> : vector<16x32xf32>
    %88 = tpu.matmul %85, %87, %cst_33 {dimension_numbers = #tpu.dot_dimension_numbers<[1], [0], [0], [1], [0, 0, 1, 1], [], []>} : vector<16x8xf32>, vector<8x32xf32>, vector<16x32xf32> -> vector<16x32xf32>
    %89 = arith.addf %63, %88 : vector<16x32xf32>
    %90 = vector.extract_strided_slice %10 {offsets = [0, 24], sizes = [16, 8], strides = [1, 1]} : vector<16x96xf32> to vector<16x8xf32>
    %91 = vector.shape_cast %90 : vector<16x8xf32> to vector<2x8x8xf32>
    %92 = vector.extract_strided_slice %10 {offsets = [0, 56], sizes = [16, 8], strides = [1, 1]} : vector<16x96xf32> to vector<16x8xf32>
    %93 = vector.shape_cast %92 : vector<16x8xf32> to vector<2x8x8xf32>
    %94 = vector.extract_strided_slice %10 {offsets = [0, 88], sizes = [16, 8], strides = [1, 1]} : vector<16x96xf32> to vector<16x8xf32>
    %95 = vector.shape_cast %94 : vector<16x8xf32> to vector<2x8x8xf32>
    "tpu.trace_start"() <{level = 10 : i32, message = "bqd,bkd->bqk"}> : () -> ()
    %cst_34 = arith.constant dense<0.000000e+00> : vector<2x8x8xf32>
    %96 = tpu.matmul %91, %93, %cst_34 {dimension_numbers = #tpu.dot_dimension_numbers<[2], [2], [1], [1], [0, 0, 0, 1, 1, 1], [0], [0]>} : vector<2x8x8xf32>, vector<2x8x8xf32>, vector<2x8x8xf32> -> vector<2x8x8xf32>
    "tpu.trace_stop"() : () -> ()
    %cst_35 = arith.constant 0.353553385 : f32
    %97 = vector.broadcast %cst_35 : f32 to vector<2x8x8xf32>
    %98 = arith.mulf %96, %97 : vector<2x8x8xf32>
    %99 = vector.broadcast %7 : vector<2x1x8xf32> to vector<2x8x8xf32>
    %100 = arith.addf %98, %99 : vector<2x8x8xf32>
    %cst_36 = arith.constant dense<0xFF800000> : vector<2x8xf32>
    %101 = vector.multi_reduction <maximumf>, %100, %cst_36 [2] : vector<2x8x8xf32> to vector<2x8xf32>
    %102 = vector.shape_cast %101 : vector<2x8xf32> to vector<2x8x1xf32>
    %103 = vector.broadcast %102 : vector<2x8x1xf32> to vector<2x8x8xf32>
    %104 = arith.subf %100, %103 : vector<2x8x8xf32>
    %105 = math.exp %104 : vector<2x8x8xf32>
    %cst_37 = arith.constant dense<0.000000e+00> : vector<2x8xf32>
    %106 = vector.multi_reduction <add>, %105, %cst_37 [2] : vector<2x8x8xf32> to vector<2x8xf32>
    %107 = vector.shape_cast %106 : vector<2x8xf32> to vector<2x8x1xf32>
    %108 = vector.broadcast %107 : vector<2x8x1xf32> to vector<2x8x8xf32>
    %109 = arith.divf %105, %108 : vector<2x8x8xf32>
    "tpu.trace_start"() <{level = 10 : i32, message = "bqk,bkd->bqd"}> : () -> ()
    %cst_38 = arith.constant dense<0.000000e+00> : vector<2x8x8xf32>
    %110 = tpu.matmul %109, %95, %cst_38 {dimension_numbers = #tpu.dot_dimension_numbers<[2], [1], [1], [2], [0, 0, 0, 1, 1, 2], [0], [0]>} : vector<2x8x8xf32>, vector<2x8x8xf32>, vector<2x8x8xf32> -> vector<2x8x8xf32>
    "tpu.trace_stop"() : () -> ()
    %111 = vector.shape_cast %110 : vector<2x8x8xf32> to vector<16x8xf32>
    %c0_39 = arith.constant 0 : index
    %c24 = arith.constant 24 : index
    %c96_40 = arith.constant 96 : index
    %112 = vector.load %arg2[%c0_39, %c24, %c96_40] : memref<1x32x192xf32, #tpu.memory_space<vmem>>, vector<1x8x32xf32>
    %113 = vector.shape_cast %112 : vector<1x8x32xf32> to vector<8x32xf32>
    %cst_41 = arith.constant dense<0.000000e+00> : vector<16x32xf32>
    %114 = tpu.matmul %111, %113, %cst_41 {dimension_numbers = #tpu.dot_dimension_numbers<[1], [0], [0], [1], [0, 0, 1, 1], [], []>} : vector<16x8xf32>, vector<8x32xf32>, vector<16x32xf32> -> vector<16x32xf32>
    %115 = arith.addf %89, %114 : vector<16x32xf32>
    %c0_42 = arith.constant 0 : index
    %c0_43 = arith.constant 0 : index
    %c0_44 = arith.constant 0 : index
    %116 = vector.load %arg4[%c0_42, %c0_43, %c0_44] : memref<1x6x64xf32, #tpu.memory_space<vmem>>, vector<1x1x32xf32>
    %117 = vector.shape_cast %116 : vector<1x1x32xf32> to vector<1x32xf32>
    %c0_45 = arith.constant 0 : index
    %c1 = arith.constant 1 : index
    %c0_46 = arith.constant 0 : index
    %118 = vector.load %arg4[%c0_45, %c1, %c0_46] : memref<1x6x64xf32, #tpu.memory_space<vmem>>, vector<1x1x32xf32>
    %119 = vector.shape_cast %118 : vector<1x1x32xf32> to vector<1x32xf32>
    %c0_47 = arith.constant 0 : index
    %c2 = arith.constant 2 : index
    %c0_48 = arith.constant 0 : index
    %120 = vector.load %arg4[%c0_47, %c2, %c0_48] : memref<1x6x64xf32, #tpu.memory_space<vmem>>, vector<1x1x64xf32>
    %121 = vector.shape_cast %120 : vector<1x1x64xf32> to vector<1x64xf32>
    %c0_49 = arith.constant 0 : index
    %c3 = arith.constant 3 : index
    %c0_50 = arith.constant 0 : index
    %122 = vector.load %arg4[%c0_49, %c3, %c0_50] : memref<1x6x64xf32, #tpu.memory_space<vmem>>, vector<1x1x32xf32>
    %123 = vector.shape_cast %122 : vector<1x1x32xf32> to vector<1x32xf32>
    %c0_51 = arith.constant 0 : index
    %c4 = arith.constant 4 : index
    %c0_52 = arith.constant 0 : index
    %124 = vector.load %arg4[%c0_51, %c4, %c0_52] : memref<1x6x64xf32, #tpu.memory_space<vmem>>, vector<1x1x32xf32>
    %125 = vector.shape_cast %124 : vector<1x1x32xf32> to vector<1x32xf32>
    %c0_53 = arith.constant 0 : index
    %c5 = arith.constant 5 : index
    %c0_54 = arith.constant 0 : index
    %126 = vector.load %arg4[%c0_53, %c5, %c0_54] : memref<1x6x64xf32, #tpu.memory_space<vmem>>, vector<1x1x32xf32>
    %127 = vector.shape_cast %126 : vector<1x1x32xf32> to vector<1x32xf32>
    %128 = arith.addf %0, %115 : vector<16x32xf32>
    %cst_55 = arith.constant dense<0.000000e+00> : vector<16xf32>
    %129 = vector.multi_reduction <add>, %128, %cst_55 [1] : vector<16x32xf32> to vector<16xf32>
    %130 = vector.shape_cast %129 : vector<16xf32> to vector<16x1xf32>
    %cst_56 = arith.constant 3.200000e+01 : f32
    %131 = vector.broadcast %cst_56 : f32 to vector<16x1xf32>
    %132 = arith.divf %130, %131 : vector<16x1xf32>
    %133 = vector.broadcast %132 : vector<16x1xf32> to vector<16x32xf32>
    %134 = arith.subf %128, %133 : vector<16x32xf32>
    %135 = arith.mulf %134, %134 : vector<16x32xf32>
    %cst_57 = arith.constant dense<0.000000e+00> : vector<16xf32>
    %136 = vector.multi_reduction <add>, %135, %cst_57 [1] : vector<16x32xf32> to vector<16xf32>
    %137 = vector.shape_cast %136 : vector<16xf32> to vector<16x1xf32>
    %cst_58 = arith.constant 3.200000e+01 : f32
    %138 = vector.broadcast %cst_58 : f32 to vector<16x1xf32>
    %139 = arith.divf %137, %138 : vector<16x1xf32>
    %140 = vector.broadcast %132 : vector<16x1xf32> to vector<16x32xf32>
    %141 = arith.subf %128, %140 : vector<16x32xf32>
    %cst_59 = arith.constant 9.99999974E-6 : f32
    %142 = vector.broadcast %cst_59 : f32 to vector<16x1xf32>
    %143 = arith.addf %139, %142 : vector<16x1xf32>
    %144 = math.rsqrt %143 : vector<16x1xf32>
    %145 = vector.broadcast %144 : vector<16x1xf32> to vector<16x32xf32>
    %146 = arith.mulf %141, %145 : vector<16x32xf32>
    %147 = vector.broadcast %117 : vector<1x32xf32> to vector<16x32xf32>
    %148 = arith.mulf %146, %147 : vector<16x32xf32>
    %149 = vector.broadcast %119 : vector<1x32xf32> to vector<16x32xf32>
    %150 = arith.addf %148, %149 : vector<16x32xf32>
    %c0_60 = arith.constant 0 : index
    %c0_61 = arith.constant 0 : index
    %c128 = arith.constant 128 : index
    %151 = vector.load %arg2[%c0_60, %c0_61, %c128] : memref<1x32x192xf32, #tpu.memory_space<vmem>>, vector<1x32x64xf32>
    %152 = vector.shape_cast %151 : vector<1x32x64xf32> to vector<32x64xf32>
    %cst_62 = arith.constant dense<0.000000e+00> : vector<16x64xf32>
    %153 = tpu.matmul %150, %152, %cst_62 {dimension_numbers = #tpu.dot_dimension_numbers<[1], [0], [0], [1], [0, 0, 1, 1], [], []>} : vector<16x32xf32>, vector<32x64xf32>, vector<16x64xf32> -> vector<16x64xf32>
    %154 = vector.broadcast %121 : vector<1x64xf32> to vector<16x64xf32>
    %155 = arith.addf %153, %154 : vector<16x64xf32>
    %cst_63 = arith.constant 0.000000e+00 : f32
    %156 = vector.broadcast %cst_63 : f32 to vector<16x64xf32>
    %157 = arith.maximumf %155, %156 : vector<16x64xf32>
    %c0_64 = arith.constant 0 : index
    %c0_65 = arith.constant 0 : index
    %c0_66 = arith.constant 0 : index
    %158 = vector.load %arg3[%c0_64, %c0_65, %c0_66] : memref<1x64x32xf32, #tpu.memory_space<vmem>>, vector<1x64x32xf32>
    %159 = vector.shape_cast %158 : vector<1x64x32xf32> to vector<64x32xf32>
    %cst_67 = arith.constant dense<0.000000e+00> : vector<16x32xf32>
    %160 = tpu.matmul %157, %159, %cst_67 {dimension_numbers = #tpu.dot_dimension_numbers<[1], [0], [0], [1], [0, 0, 1, 1], [], []>} : vector<16x64xf32>, vector<64x32xf32>, vector<16x32xf32> -> vector<16x32xf32>
    %161 = vector.broadcast %123 : vector<1x32xf32> to vector<16x32xf32>
    %162 = arith.addf %160, %161 : vector<16x32xf32>
    %163 = arith.addf %150, %162 : vector<16x32xf32>
    %cst_68 = arith.constant dense<0.000000e+00> : vector<16xf32>
    %164 = vector.multi_reduction <add>, %163, %cst_68 [1] : vector<16x32xf32> to vector<16xf32>
    %165 = vector.shape_cast %164 : vector<16xf32> to vector<16x1xf32>
    %cst_69 = arith.constant 3.200000e+01 : f32
    %166 = vector.broadcast %cst_69 : f32 to vector<16x1xf32>
    %167 = arith.divf %165, %166 : vector<16x1xf32>
    %168 = vector.broadcast %167 : vector<16x1xf32> to vector<16x32xf32>
    %169 = arith.subf %163, %168 : vector<16x32xf32>
    %170 = arith.mulf %169, %169 : vector<16x32xf32>
    %cst_70 = arith.constant dense<0.000000e+00> : vector<16xf32>
    %171 = vector.multi_reduction <add>, %170, %cst_70 [1] : vector<16x32xf32> to vector<16xf32>
    %172 = vector.shape_cast %171 : vector<16xf32> to vector<16x1xf32>
    %cst_71 = arith.constant 3.200000e+01 : f32
    %173 = vector.broadcast %cst_71 : f32 to vector<16x1xf32>
    %174 = arith.divf %172, %173 : vector<16x1xf32>
    %175 = vector.broadcast %167 : vector<16x1xf32> to vector<16x32xf32>
    %176 = arith.subf %163, %175 : vector<16x32xf32>
    %cst_72 = arith.constant 9.99999974E-6 : f32
    %177 = vector.broadcast %cst_72 : f32 to vector<16x1xf32>
    %178 = arith.addf %174, %177 : vector<16x1xf32>
    %179 = math.rsqrt %178 : vector<16x1xf32>
    %180 = vector.broadcast %179 : vector<16x1xf32> to vector<16x32xf32>
    %181 = arith.mulf %176, %180 : vector<16x32xf32>
    %182 = vector.broadcast %125 : vector<1x32xf32> to vector<16x32xf32>
    %183 = arith.mulf %181, %182 : vector<16x32xf32>
    %184 = vector.broadcast %127 : vector<1x32xf32> to vector<16x32xf32>
    %185 = arith.addf %183, %184 : vector<16x32xf32>
    %c0_73 = arith.constant 0 : index
    %c0_74 = arith.constant 0 : index
    %186 = vector.load %arg5[%c0_73, %c0_74] : memref<16x32xf32, #tpu.memory_space<vmem>>, vector<16x32xf32>
    tpu.vector_store %arg5[%c0_73, %c0_74], %185 {strides = array<i32>} : memref<16x32xf32, #tpu.memory_space<vmem>>, vector<16x32xf32>,
    return
  }
}

</mosaic_0001>

<llo_original>
// kernel: tpu_custom_call.1
$region0: #{tpu_custom_call.1}
  #allocation0 [shape = 'u32[]', space=smem, size = 0x4, offset = 0x4, fixed_abs, tag = 'smem constant byte address 0x4 - core index']
  #allocation1 [shape = 'u32[72,128]{1,0:T(1,128)}', space=vmem, size = 0x9000, scoped, tag = 'internal scratch']
  %s0 = inlined_call_operand.vmem [shape: f32[16,32], index: 0, kind: input, shape index: {}]
  %s1 = inlined_call_operand.vmem [shape: s32[2,1,1], index: 1, kind: input, shape index: {}]
  %s2 = inlined_call_operand.vmem [shape: f32[1,32,192], index: 2, kind: input, shape index: {}]
  %s3 = inlined_call_operand.vmem [shape: f32[1,64,32], index: 3, kind: input, shape index: {}]
  %s4 = inlined_call_operand.vmem [shape: f32[1,6,64], index: 4, kind: input, shape index: {}]
  %s5 = inlined_call_operand.hbm [shape: f32[16,32], index: 5, kind: output, shape index: {}]
  %s6 = sld [smem:[#allocation0]]
  $region30: #{tpu_custom_call.1} parent=0
    _
  %s8 = ssub.s32 1, %s6
  %s9 = scalar_select 0, %s8, %s6
  $region1: #{tpu_custom_call.1} parent=0
    #allocation2 [shape = 'u8[8192]{0}', space=vmem, size = 0x2000, scoped, tag = 'output window, operand 0, single buffered']
    #allocation3 [shape = 's32[1]{0}', space=sflag, size = 0x4, scoped, tag = 'scoped memory for tpu_custom_call.1']
    %10 = vsyncpa [#allocation3], 0
    // Predicated region
    $region2: #{tpu_custom_call.1} parent=1 // pred_check
      _
    $region3: #{tpu_custom_call.1} parent=1 // pred_check_branch
      %12 = sbr.rel (0) target = $region5
    $region4: #{tpu_custom_call.1} parent=1 // pred_region
      _
    $region5: #{tpu_custom_call.1} parent=1 // pred_fallthru
      _
    // Predicated region
    $region6: #{tpu_custom_call.1} parent=1 // pred_check
      _
    $region7: #{tpu_custom_call.1} parent=1 // pred_check_branch
      %14 = sbr.rel (0) target = $region9
    $region8: #{tpu_custom_call.1} parent=1 // pred_region
      _
    $region9: #{tpu_custom_call.1} parent=1 // pred_fallthru
      _
    // Predicated region
    $region10: #{tpu_custom_call.1} parent=1 // pred_check
      _
    $region11: #{tpu_custom_call.1} parent=1 // pred_check_branch
      %16 = sbr.rel (0) target = $region13
    $region12: #{tpu_custom_call.1} parent=1 // pred_region
      _
    $region13: #{tpu_custom_call.1} parent=1 // pred_fallthru
      _
    // Predicated region
    $region14: #{tpu_custom_call.1} parent=1 // pred_check
      _
    $region15: #{tpu_custom_call.1} parent=1 // pred_check_branch
      %18 = sbr.rel (0) target = $region17
    $region16: #{tpu_custom_call.1} parent=1 // pred_region
      _
    $region17: #{tpu_custom_call.1} parent=1 // pred_fallthru
      _
    // Predicated region
    $region18: #{tpu_custom_call.1} parent=1 // pred_check
      _
    $region19: #{tpu_custom_call.1} parent=1 // pred_check_branch
      %20 = sbr.rel (0) target = $region21
    $region20: #{tpu_custom_call.1} parent=1 // pred_region
      _
    $region21: #{tpu_custom_call.1} parent=1 // pred_fallthru
      _
    %v21 = vld [vmem:[%s0] sm:$0xff]
    %v22 = vld [vmem:[%s0 + $0x8] sm:$0xff]
    %v23 = vlaneseq
    %v24 = vand.u32 %v23, 127
    %v25 = vld [vmem:[%s1] sm:$0x1]
    %v26 = vld [vmem:[%s1 + $0x1] sm:$0x1]
    %27 = vset.pattern.permute.xlu0 0
    %28 = vperm.xlu0 %27, %v25
    %v29 = vpop.permute.xlu0 %28
    %v30 = vperm.slane %v29, 0
    %31 = vset.pattern.permute.xlu0 0
    %32 = vperm.xlu0 %31, %v26
    %v33 = vpop.permute.xlu0 %32
    %v34 = vperm.slane %v33, 0
    %vm35 = vcmp.lt.s32.totalorder %v24, %v30
    %vm36 = vcmp.lt.s32.totalorder %v24, %v34
    %v37 = vsel %vm35, 0.0, -1000000.0
    %v38 = vsel %vm36, 0.0, -1000000.0
    %v39 = vld [vmem:[%s2] sm:$0xff]
    %v40 = vld [vmem:[%s2 + $0x10] sm:$0xff]
    %v41 = vld [vmem:[%s2 + $0x20] sm:$0xff]
    %v42 = vld [vmem:[%s2 + $0x30] sm:$0xff]
    %vm43 = vcmask 261120
    %v45 = vsel %vm43, %v21, 0
    %v48 = vsel %vm43, %v22, 0
    %50 = vmatpush.msra.mxu0 0.0
    %51 = vmatpush.msra.mxu0 0.0
    %52 = vmatpush.msra.mxu0 0.0
    %53 = vmatpush.msra.mxu0 0.0
    %54 = vmatpush.msra.mxu0 0.0
    %55 = vmatpush.msra.mxu0 0.0
    %56 = vmatpush.msra.mxu0 0.0
    %57 = vmatpush.msra.mxu0 0.0
    %58 = vmatpush.msra.mxu0 0.0
    %59 = vmatpush.msra.mxu0 0.0
    %60 = vmatpush.msra.mxu0 0.0
    %61 = vmatpush.msra.mxu0 0.0
    %62 = vmatpush.msra.mxu0 %v42
    %63 = vmatpush.msra.mxu0 %v41
    %64 = vmatpush.msra.mxu0 %v40
    %65 = vmatpush.msra.mxu0 %v39
    %66 = vmatmul.f32.gmra.mxu0 %v45
    %v67 = vpop.f32.mrf.mxu0
    %v68 = vadd.f32 0.0, %v67
    %69 = vmatmul.f32.gmra.mxu0 %v48
    %v70 = vpop.f32.mrf.mxu0
    %v71 = vadd.f32 0.0, %v70
    %72 = vdwg.mxu0
    %74 = vrot.lane.b32.xlu0 %v68, 96
    %v75 = vpop.permute.xlu0 %74
    %vm76 = vcmask 64512
    %v77 = vsel %vm76, %v68, 0
    %v79 = vsel %vm76, %v75, 0
    %81 = vmatpush.xpose.msra.mxu0 0.0
    %82 = vmatpush.xpose.msra.mxu0 0.0
    %83 = vmatpush.xpose.msra.mxu0 0.0
    %84 = vmatpush.xpose.msra.mxu0 0.0
    %85 = vmatpush.xpose.msra.mxu0 0.0
    %86 = vmatpush.xpose.msra.mxu0 0.0
    %87 = vmatpush.xpose.msra.mxu0 0.0
    %88 = vmatpush.xpose.msra.mxu0 0.0
    %89 = vmatpush.xpose.msra.mxu0 0.0
    %90 = vmatpush.xpose.msra.mxu0 0.0
    %91 = vmatpush.xpose.msra.mxu0 0.0
    %92 = vmatpush.xpose.msra.mxu0 0.0
    %93 = vmatpush.xpose.msra.mxu0 0.0
    %94 = vmatpush.xpose.msra.mxu0 0.0
    %95 = vmatpush.xpose.msra.mxu0 0.0
    %96 = vmatpush.xpose.msra.mxu0 %v79
    %97 = vmatmul.f32.gmra.mxu0 %v77
    %v98 = vpop.f32.mrf.mxu0
    %v99 = vadd.f32 0.0, %v98
    %100 = vdwg.mxu0
    %102 = vrot.lane.b32.xlu0 %v71, 96
    %v103 = vpop.permute.xlu0 %102
    %v104 = vsel %vm76, %v71, 0
    %v106 = vsel %vm76, %v103, 0
    %108 = vmatpush.xpose.msra.mxu0 0.0
    %109 = vmatpush.xpose.msra.mxu0 0.0
    %110 = vmatpush.xpose.msra.mxu0 0.0
    %111 = vmatpush.xpose.msra.mxu0 0.0
    %112 = vmatpush.xpose.msra.mxu0 0.0
    %113 = vmatpush.xpose.msra.mxu0 0.0
    %114 = vmatpush.xpose.msra.mxu0 0.0
    %115 = vmatpush.xpose.msra.mxu0 0.0
    %116 = vmatpush.xpose.msra.mxu0 0.0
    %117 = vmatpush.xpose.msra.mxu0 0.0
    %118 = vmatpush.xpose.msra.mxu0 0.0
    %119 = vmatpush.xpose.msra.mxu0 0.0
    %120 = vmatpush.xpose.msra.mxu0 0.0
    %121 = vmatpush.xpose.msra.mxu0 0.0
    %122 = vmatpush.xpose.msra.mxu0 0.0
    %123 = vmatpush.xpose.msra.mxu0 %v106
    %124 = vmatmul.f32.gmra.mxu0 %v104
    %v125 = vpop.f32.mrf.mxu0
    %v126 = vadd.f32 0.0, %v125
    %127 = vdwg.mxu0
    %v128 = vmul.f32 %v99, 0.35355338
    %v129 = vmul.f32 %v126, 0.35355338
    %v130 = vadd.f32 %v128, %v37
    %v131 = vadd.f32 %v129, %v38
    %v132 = vsel %vm76, %v130, -inf
    %133 = vmax.xlane.f32.xlu0 %v132
    %v134 = vpop.xlane.xlu0 %133
    %v135 = vsel %vm76, %v131, -inf
    %136 = vmax.xlane.f32.xlu0 %v135
    %v137 = vpop.xlane.xlu0 %136
    %v138 = vsub.f32 %v130, %v134
    %v139 = vsub.f32 %v131, %v137
    %v140 = vmul.f32 %v138, 1.442695
    %v141 = vpow.pop %v140
    %v142 = vmul.f32 %v139, 1.442695
    %v143 = vpow.pop %v142
    %v144 = vsel %vm76, %v141, 0.0
    %145 = vadd.xlane.f32.xlu0 %v144
    %v146 = vpop.xlane.xlu0 %145
    %v147 = vsel %vm76, %v143, 0.0
    %148 = vadd.xlane.f32.xlu0 %v147
    %v149 = vpop.xlane.xlu0 %148
    %v150 = vrcp.pop %v146
    %v151 = vmul.f32 %v146, %v150
    %v152 = vsub.f32 1.0, %v151
    %v153 = vmul.f32 %v150, %v152
    %v154 = vadd.f32 %v150, %v153
    %vm155 = vweird.f32 %v146
    %vm156 = vweird.f32 %v150
    %vm157 = vmor %vm155, %vm156
    %v158 = vsel %vm157, %v150, %v154
    %v159 = vand.u32 2147483647, %v146
    %vm160 = vcmp.eq.f32.partialorder %v159, 8.507059e+37
    %v161 = vand.u32 %v146, 2147483648
    %v162 = vor.u32 1.1754944e-38, %v161
    %v163 = vsel %vm160, %v162, %v158
    %v164 = vmul.f32 %v141, %v163
    %v165 = vrcp.pop %v149
    %v166 = vmul.f32 %v149, %v165
    %v167 = vsub.f32 1.0, %v166
    %v168 = vmul.f32 %v165, %v167
    %v169 = vadd.f32 %v165, %v168
    %vm170 = vweird.f32 %v149
    %vm171 = vweird.f32 %v165
    %vm172 = vmor %vm170, %vm171
    %v173 = vsel %vm172, %v165, %v169
    %v174 = vand.u32 2147483647, %v149
    %vm175 = vcmp.eq.f32.partialorder %v174, 8.507059e+37
    %v176 = vand.u32 %v149, 2147483648
    %v177 = vor.u32 1.1754944e-38, %v176
    %v178 = vsel %vm175, %v177, %v173
    %v179 = vmul.f32 %v143, %v178
    %180 = vrot.lane.b32.xlu0 %v68, 64
    %v181 = vpop.permute.xlu0 %180
    %v184 = vsel %vm76, %v164, 0
    %186 = vmatpush.msra.mxu0 0.0
    %187 = vmatpush.msra.mxu0 0.0
    %188 = vmatpush.msra.mxu0 0.0
    %189 = vmatpush.msra.mxu0 0.0
    %190 = vmatpush.msra.mxu0 0.0
    %191 = vmatpush.msra.mxu0 0.0
    %192 = vmatpush.msra.mxu0 0.0
    %193 = vmatpush.msra.mxu0 0.0
    %194 = vmatpush.msra.mxu0 0.0
    %195 = vmatpush.msra.mxu0 0.0
    %196 = vmatpush.msra.mxu0 0.0
    %197 = vmatpush.msra.mxu0 0.0
    %198 = vmatpush.msra.mxu0 0.0
    %199 = vmatpush.msra.mxu0 0.0
    %200 = vmatpush.msra.mxu0 0.0
    %201 = vmatpush.msra.mxu0 %v181
    %202 = vmatmul.f32.gmra.mxu0 %v184
    %v203 = vpop.f32.mrf.mxu0
    %v204 = vadd.f32 0.0, %v203
    %205 = vdwg.mxu0
    %206 = vrot.lane.b32.xlu0 %v71, 64
    %v207 = vpop.permute.xlu0 %206
    %v210 = vsel %vm76, %v179, 0
    %212 = vmatpush.msra.mxu0 0.0
    %213 = vmatpush.msra.mxu0 0.0
    %214 = vmatpush.msra.mxu0 0.0
    %215 = vmatpush.msra.mxu0 0.0
    %216 = vmatpush.msra.mxu0 0.0
    %217 = vmatpush.msra.mxu0 0.0
    %218 = vmatpush.msra.mxu0 0.0
    %219 = vmatpush.msra.mxu0 0.0
    %220 = vmatpush.msra.mxu0 0.0
    %221 = vmatpush.msra.mxu0 0.0
    %222 = vmatpush.msra.mxu0 0.0
    %223 = vmatpush.msra.mxu0 0.0
    %224 = vmatpush.msra.mxu0 0.0
    %225 = vmatpush.msra.mxu0 0.0
    %226 = vmatpush.msra.mxu0 0.0
    %227 = vmatpush.msra.mxu0 %v207
    %228 = vmatmul.f32.gmra.mxu0 %v210
    %v229 = vpop.f32.mrf.mxu0
    %v230 = vadd.f32 0.0, %v229
    %231 = vdwg.mxu0
    %v232 = vld [vmem:[%s2] sm:$0xff]
    %233 = vrot.lane.b32.xlu0 %v68, 120
    %v234 = vpop.permute.xlu0 %233
    %235 = vrot.lane.b32.xlu0 %v68, 88
    %v236 = vpop.permute.xlu0 %235
    %v237 = vsel %vm76, %v234, 0
    %v239 = vsel %vm76, %v236, 0
    %241 = vmatpush.xpose.msra.mxu0 0.0
    %242 = vmatpush.xpose.msra.mxu0 0.0
    %243 = vmatpush.xpose.msra.mxu0 0.0
    %244 = vmatpush.xpose.msra.mxu0 0.0
    %245 = vmatpush.xpose.msra.mxu0 0.0
    %246 = vmatpush.xpose.msra.mxu0 0.0
    %247 = vmatpush.xpose.msra.mxu0 0.0
    %248 = vmatpush.xpose.msra.mxu0 0.0
    %249 = vmatpush.xpose.msra.mxu0 0.0
    %250 = vmatpush.xpose.msra.mxu0 0.0
    %251 = vmatpush.xpose.msra.mxu0 0.0
    %252 = vmatpush.xpose.msra.mxu0 0.0
    %253 = vmatpush.xpose.msra.mxu0 0.0
    %254 = vmatpush.xpose.msra.mxu0 0.0
    %255 = vmatpush.xpose.msra.mxu0 0.0
    %256 = vmatpush.xpose.msra.mxu0 %v239
    %257 = vmatmul.f32.gmra.mxu0 %v237
    %v258 = vpop.f32.mrf.mxu0
    %v259 = vadd.f32 0.0, %v258
    %260 = vdwg.mxu0
    %261 = vrot.lane.b32.xlu0 %v71, 120
    %v262 = vpop.permute.xlu0 %261
    %263 = vrot.lane.b32.xlu0 %v71, 88
    %v264 = vpop.permute.xlu0 %263
    %v265 = vsel %vm76, %v262, 0
    %v267 = vsel %vm76, %v264, 0
    %269 = vmatpush.xpose.msra.mxu0 0.0
    %270 = vmatpush.xpose.msra.mxu0 0.0
    %271 = vmatpush.xpose.msra.mxu0 0.0
    %272 = vmatpush.xpose.msra.mxu0 0.0
    %273 = vmatpush.xpose.msra.mxu0 0.0
    %274 = vmatpush.xpose.msra.mxu0 0.0
    %275 = vmatpush.xpose.msra.mxu0 0.0
    %276 = vmatpush.xpose.msra.mxu0 0.0
    %277 = vmatpush.xpose.msra.mxu0 0.0
    %278 = vmatpush.xpose.msra.mxu0 0.0
    %279 = vmatpush.xpose.msra.mxu0 0.0
    %280 = vmatpush.xpose.msra.mxu0 0.0
    %281 = vmatpush.xpose.msra.mxu0 0.0
    %282 = vmatpush.xpose.msra.mxu0 0.0
    %283 = vmatpush.xpose.msra.mxu0 0.0
    %284 = vmatpush.xpose.msra.mxu0 %v267
    %285 = vmatmul.f32.gmra.mxu0 %v265
    %v286 = vpop.f32.mrf.mxu0
    %v287 = vadd.f32 0.0, %v286
    %288 = vdwg.mxu0
    %v289 = vmul.f32 %v259, 0.35355338
    %v290 = vmul.f32 %v287, 0.35355338
    %v291 = vadd.f32 %v289, %v37
    %v292 = vadd.f32 %v290, %v38
    %v293 = vsel %vm76, %v291, -inf
    %294 = vmax.xlane.f32.xlu0 %v293
    %v295 = vpop.xlane.xlu0 %294
    %v296 = vsel %vm76, %v292, -inf
    %297 = vmax.xlane.f32.xlu0 %v296
    %v298 = vpop.xlane.xlu0 %297
    %v299 = vsub.f32 %v291, %v295
    %v300 = vsub.f32 %v292, %v298
    %v301 = vmul.f32 %v299, 1.442695
    %v302 = vpow.pop %v301
    %v303 = vmul.f32 %v300, 1.442695
    %v304 = vpow.pop %v303
    %v305 = vsel %vm76, %v302, 0.0
    %306 = vadd.xlane.f32.xlu0 %v305
    %v307 = vpop.xlane.xlu0 %306
    %v308 = vsel %vm76, %v304, 0.0
    %309 = vadd.xlane.f32.xlu0 %v308
    %v310 = vpop.xlane.xlu0 %309
    %v311 = vrcp.pop %v307
    %v312 = vmul.f32 %v307, %v311
    %v313 = vsub.f32 1.0, %v312
    %v314 = vmul.f32 %v311, %v313
    %v315 = vadd.f32 %v311, %v314
    %vm316 = vweird.f32 %v307
    %vm317 = vweird.f32 %v311
    %vm318 = vmor %vm316, %vm317
    %v319 = vsel %vm318, %v311, %v315
    %v320 = vand.u32 2147483647, %v307
    %vm321 = vcmp.eq.f32.partialorder %v320, 8.507059e+37
    %v322 = vand.u32 %v307, 2147483648
    %v323 = vor.u32 1.1754944e-38, %v322
    %v324 = vsel %vm321, %v323, %v319
    %v325 = vmul.f32 %v302, %v324
    %v326 = vrcp.pop %v310
    %v327 = vmul.f32 %v310, %v326
    %v328 = vsub.f32 1.0, %v327
    %v329 = vmul.f32 %v326, %v328
    %v330 = vadd.f32 %v326, %v329
    %vm331 = vweird.f32 %v310
    %vm332 = vweird.f32 %v326
    %vm333 = vmor %vm331, %vm332
    %v334 = vsel %vm333, %v326, %v330
    %v335 = vand.u32 2147483647, %v310
    %vm336 = vcmp.eq.f32.partialorder %v335, 8.507059e+37
    %v337 = vand.u32 %v310, 2147483648
    %v338 = vor.u32 1.1754944e-38, %v337
    %v339 = vsel %vm336, %v338, %v334
    %v340 = vmul.f32 %v304, %v339
    %341 = vrot.lane.b32.xlu0 %v68, 56
    %v342 = vpop.permute.xlu0 %341
    %v345 = vsel %vm76, %v325, 0
    %347 = vmatpush.msra.mxu0 0.0
    %348 = vmatpush.msra.mxu0 0.0
    %349 = vmatpush.msra.mxu0 0.0
    %350 = vmatpush.msra.mxu0 0.0
    %351 = vmatpush.msra.mxu0 0.0
    %352 = vmatpush.msra.mxu0 0.0
    %353 = vmatpush.msra.mxu0 0.0
    %354 = vmatpush.msra.mxu0 0.0
    %355 = vmatpush.msra.mxu0 0.0
    %356 = vmatpush.msra.mxu0 0.0
    %357 = vmatpush.msra.mxu0 0.0
    %358 = vmatpush.msra.mxu0 0.0
    %359 = vmatpush.msra.mxu0 0.0
    %360 = vmatpush.msra.mxu0 0.0
    %361 = vmatpush.msra.mxu0 0.0
    %362 = vmatpush.msra.mxu0 %v342
    %363 = vmatmul.f32.gmra.mxu0 %v345
    %v364 = vpop.f32.mrf.mxu0
    %v365 = vadd.f32 0.0, %v364
    %366 = vdwg.mxu0
    %367 = vrot.lane.b32.xlu0 %v71, 56
    %v368 = vpop.permute.xlu0 %367
    %v371 = vsel %vm76, %v340, 0
    %373 = vmatpush.msra.mxu0 0.0
    %374 = vmatpush.msra.mxu0 0.0
    %375 = vmatpush.msra.mxu0 0.0
    %376 = vmatpush.msra.mxu0 0.0
    %377 = vmatpush.msra.mxu0 0.0
    %378 = vmatpush.msra.mxu0 0.0
    %379 = vmatpush.msra.mxu0 0.0
    %380 = vmatpush.msra.mxu0 0.0
    %381 = vmatpush.msra.mxu0 0.0
    %382 = vmatpush.msra.mxu0 0.0
    %383 = vmatpush.msra.mxu0 0.0
    %384 = vmatpush.msra.mxu0 0.0
    %385 = vmatpush.msra.mxu0 0.0
    %386 = vmatpush.msra.mxu0 0.0
    %387 = vmatpush.msra.mxu0 0.0
    %388 = vmatpush.msra.mxu0 %v368
    %389 = vmatmul.f32.gmra.mxu0 %v371
    %v390 = vpop.f32.mrf.mxu0
    %v391 = vadd.f32 0.0, %v390
    %392 = vdwg.mxu0
    %v393 = vld [vmem:[%s2 + $0x10] sm:$0xff]
    %395 = vrot.lane.b32.xlu0 %v393, 32
    %v396 = vpop.permute.xlu0 %395
    %v399 = vsel %vm76, %v365, 0
    %v402 = vsel %vm76, %v391, 0
    %404 = vmatpush.msra.mxu0 0.0
    %405 = vmatpush.msra.mxu0 0.0
    %406 = vmatpush.msra.mxu0 0.0
    %407 = vmatpush.msra.mxu0 0.0
    %408 = vmatpush.msra.mxu0 0.0
    %409 = vmatpush.msra.mxu0 0.0
    %410 = vmatpush.msra.mxu0 0.0
    %411 = vmatpush.msra.mxu0 0.0
    %412 = vmatpush.msra.mxu0 0.0
    %413 = vmatpush.msra.mxu0 0.0
    %414 = vmatpush.msra.mxu0 0.0
    %415 = vmatpush.msra.mxu0 0.0
    %416 = vmatpush.msra.mxu0 0.0
    %417 = vmatpush.msra.mxu0 0.0
    %418 = vmatpush.msra.mxu0 0.0
    %419 = vmatpush.msra.mxu0 %v396
    %420 = vmatmul.f32.gmra.mxu0 %v399
    %v421 = vpop.f32.mrf.mxu0
    %v422 = vadd.f32 0.0, %v421
    %423 = vmatmul.f32.gmra.mxu0 %v402
    %v424 = vpop.f32.mrf.mxu0
    %v425 = vadd.f32 0.0, %v424
    %426 = vdwg.mxu0
    %428 = vrot.lane.b32.xlu0 %v232, 32
    %v429 = vpop.permute.xlu0 %428
    %v432 = vsel %vm76, %v204, 0
    %v435 = vsel %vm76, %v230, 0
    %437 = vmatpush.msra.mxu0 0.0
    %438 = vmatpush.msra.mxu0 0.0
    %439 = vmatpush.msra.mxu0 0.0
    %440 = vmatpush.msra.mxu0 0.0
    %441 = vmatpush.msra.mxu0 0.0
    %442 = vmatpush.msra.mxu0 0.0
    %443 = vmatpush.msra.mxu0 0.0
    %444 = vmatpush.msra.mxu0 0.0
    %445 = vmatpush.msra.mxu0 0.0
    %446 = vmatpush.msra.mxu0 0.0
    %447 = vmatpush.msra.mxu0 0.0
    %448 = vmatpush.msra.mxu0 0.0
    %449 = vmatpush.msra.mxu0 0.0
    %450 = vmatpush.msra.mxu0 0.0
    %451 = vmatpush.msra.mxu0 0.0
    %452 = vmatpush.msra.mxu0 %v429
    %453 = vmatmul.f32.gmra.mxu0 %v432
    %v454 = vpop.f32.mrf.mxu0
    %v455 = vadd.f32 %v422, %v454
    %456 = vmatmul.f32.gmra.mxu0 %v435
    %v457 = vpop.f32.mrf.mxu0
    %v458 = vadd.f32 %v425, %v457
    %459 = vdwg.mxu0
    %460 = vrot.lane.b32.xlu0 %v68, 112
    %v461 = vpop.permute.xlu0 %460
    %462 = vrot.lane.b32.xlu0 %v68, 80
    %v463 = vpop.permute.xlu0 %462
    %v464 = vsel %vm76, %v461, 0
    %v466 = vsel %vm76, %v463, 0
    %468 = vmatpush.xpose.msra.mxu0 0.0
    %469 = vmatpush.xpose.msra.mxu0 0.0
    %470 = vmatpush.xpose.msra.mxu0 0.0
    %471 = vmatpush.xpose.msra.mxu0 0.0
    %472 = vmatpush.xpose.msra.mxu0 0.0
    %473 = vmatpush.xpose.msra.mxu0 0.0
    %474 = vmatpush.xpose.msra.mxu0 0.0
    %475 = vmatpush.xpose.msra.mxu0 0.0
    %476 = vmatpush.xpose.msra.mxu0 0.0
    %477 = vmatpush.xpose.msra.mxu0 0.0
    %478 = vmatpush.xpose.msra.mxu0 0.0
    %479 = vmatpush.xpose.msra.mxu0 0.0
    %480 = vmatpush.xpose.msra.mxu0 0.0
    %481 = vmatpush.xpose.msra.mxu0 0.0
    %482 = vmatpush.xpose.msra.mxu0 0.0
    %483 = vmatpush.xpose.msra.mxu0 %v466
    %484 = vmatmul.f32.gmra.mxu0 %v464
    %v485 = vpop.f32.mrf.mxu0
    %v486 = vadd.f32 0.0, %v485
    %487 = vdwg.mxu0
    %488 = vrot.lane.b32.xlu0 %v71, 112
    %v489 = vpop.permute.xlu0 %488
    %490 = vrot.lane.b32.xlu0 %v71, 80
    %v491 = vpop.permute.xlu0 %490
    %v492 = vsel %vm76, %v489, 0
    %v494 = vsel %vm76, %v491, 0
    %496 = vmatpush.xpose.msra.mxu0 0.0
    %497 = vmatpush.xpose.msra.mxu0 0.0
    %498 = vmatpush.xpose.msra.mxu0 0.0
    %499 = vmatpush.xpose.msra.mxu0 0.0
    %500 = vmatpush.xpose.msra.mxu0 0.0
    %501 = vmatpush.xpose.msra.mxu0 0.0
    %502 = vmatpush.xpose.msra.mxu0 0.0
    %503 = vmatpush.xpose.msra.mxu0 0.0
    %504 = vmatpush.xpose.msra.mxu0 0.0
    %505 = vmatpush.xpose.msra.mxu0 0.0
    %506 = vmatpush.xpose.msra.mxu0 0.0
    %507 = vmatpush.xpose.msra.mxu0 0.0
    %508 = vmatpush.xpose.msra.mxu0 0.0
    %509 = vmatpush.xpose.msra.mxu0 0.0
    %510 = vmatpush.xpose.msra.mxu0 0.0
    %511 = vmatpush.xpose.msra.mxu0 %v494
    %512 = vmatmul.f32.gmra.mxu0 %v492
    %v513 = vpop.f32.mrf.mxu0
    %v514 = vadd.f32 0.0, %v513
    %515 = vdwg.mxu0
    %v516 = vmul.f32 %v486, 0.35355338
    %v517 = vmul.f32 %v514, 0.35355338
    %v518 = vadd.f32 %v516, %v37
    %v519 = vadd.f32 %v517, %v38
    %v520 = vsel %vm76, %v518, -inf
    %521 = vmax.xlane.f32.xlu0 %v520
    %v522 = vpop.xlane.xlu0 %521
    %v523 = vsel %vm76, %v519, -inf
    %524 = vmax.xlane.f32.xlu0 %v523
    %v525 = vpop.xlane.xlu0 %524
    %v526 = vsub.f32 %v518, %v522
    %v527 = vsub.f32 %v519, %v525
    %v528 = vmul.f32 %v526, 1.442695
    %v529 = vpow.pop %v528
    %v530 = vmul.f32 %v527, 1.442695
    %v531 = vpow.pop %v530
    %v532 = vsel %vm76, %v529, 0.0
    %533 = vadd.xlane.f32.xlu0 %v532
    %v534 = vpop.xlane.xlu0 %533
    %v535 = vsel %vm76, %v531, 0.0
    %536 = vadd.xlane.f32.xlu0 %v535
    %v537 = vpop.xlane.xlu0 %536
    %v538 = vrcp.pop %v534
    %v539 = vmul.f32 %v534, %v538
    %v540 = vsub.f32 1.0, %v539
    %v541 = vmul.f32 %v538, %v540
    %v542 = vadd.f32 %v538, %v541
    %vm543 = vweird.f32 %v534
    %vm544 = vweird.f32 %v538
    %vm545 = vmor %vm543, %vm544
    %v546 = vsel %vm545, %v538, %v542
    %v547 = vand.u32 2147483647, %v534
    %vm548 = vcmp.eq.f32.partialorder %v547, 8.507059e+37
    %v549 = vand.u32 %v534, 2147483648
    %v550 = vor.u32 1.1754944e-38, %v549
    %v551 = vsel %vm548, %v550, %v546
    %v552 = vmul.f32 %v529, %v551
    %v553 = vrcp.pop %v537
    %v554 = vmul.f32 %v537, %v553
    %v555 = vsub.f32 1.0, %v554
    %v556 = vmul.f32 %v553, %v555
    %v557 = vadd.f32 %v553, %v556
    %vm558 = vweird.f32 %v537
    %vm559 = vweird.f32 %v553
    %vm560 = vmor %vm558, %vm559
    %v561 = vsel %vm560, %v553, %v557
    %v562 = vand.u32 2147483647, %v537
    %vm563 = vcmp.eq.f32.partialorder %v562, 8.507059e+37
    %v564 = vand.u32 %v537, 2147483648
    %v565 = vor.u32 1.1754944e-38, %v564
    %v566 = vsel %vm563, %v565, %v561
    %v567 = vmul.f32 %v531, %v566
    %568 = vrot.lane.b32.xlu0 %v68, 48
    %v569 = vpop.permute.xlu0 %568
    %v572 = vsel %vm76, %v552, 0
    %574 = vmatpush.msra.mxu0 0.0
    %575 = vmatpush.msra.mxu0 0.0
    %576 = vmatpush.msra.mxu0 0.0
    %577 = vmatpush.msra.mxu0 0.0
    %578 = vmatpush.msra.mxu0 0.0
    %579 = vmatpush.msra.mxu0 0.0
    %580 = vmatpush.msra.mxu0 0.0
    %581 = vmatpush.msra.mxu0 0.0
    %582 = vmatpush.msra.mxu0 0.0
    %583 = vmatpush.msra.mxu0 0.0
    %584 = vmatpush.msra.mxu0 0.0
    %585 = vmatpush.msra.mxu0 0.0
    %586 = vmatpush.msra.mxu0 0.0
    %587 = vmatpush.msra.mxu0 0.0
    %588 = vmatpush.msra.mxu0 0.0
    %589 = vmatpush.msra.mxu0 %v569
    %590 = vmatmul.f32.gmra.mxu0 %v572
    %v591 = vpop.f32.mrf.mxu0
    %v592 = vadd.f32 0.0, %v591
    %593 = vdwg.mxu0
    %594 = vrot.lane.b32.xlu0 %v71, 48
    %v595 = vpop.permute.xlu0 %594
    %v598 = vsel %vm76, %v567, 0
    %600 = vmatpush.msra.mxu0 0.0
    %601 = vmatpush.msra.mxu0 0.0
    %602 = vmatpush.msra.mxu0 0.0
    %603 = vmatpush.msra.mxu0 0.0
    %604 = vmatpush.msra.mxu0 0.0
    %605 = vmatpush.msra.mxu0 0.0
    %606 = vmatpush.msra.mxu0 0.0
    %607 = vmatpush.msra.mxu0 0.0
    %608 = vmatpush.msra.mxu0 0.0
    %609 = vmatpush.msra.mxu0 0.0
    %610 = vmatpush.msra.mxu0 0.0
    %611 = vmatpush.msra.mxu0 0.0
    %612 = vmatpush.msra.mxu0 0.0
    %613 = vmatpush.msra.mxu0 0.0
    %614 = vmatpush.msra.mxu0 0.0
    %615 = vmatpush.msra.mxu0 %v595
    %616 = vmatmul.f32.gmra.mxu0 %v598
    %v617 = vpop.f32.mrf.mxu0
    %v618 = vadd.f32 0.0, %v617
    %619 = vdwg.mxu0
    %v620 = vld [vmem:[%s2 + $0x20] sm:$0xff]
    %622 = vrot.lane.b32.xlu0 %v620, 32
    %v623 = vpop.permute.xlu0 %622
    %v626 = vsel %vm76, %v592, 0
    %v629 = vsel %vm76, %v618, 0
    %631 = vmatpush.msra.mxu0 0.0
    %632 = vmatpush.msra.mxu0 0.0
    %633 = vmatpush.msra.mxu0 0.0
    %634 = vmatpush.msra.mxu0 0.0
    %635 = vmatpush.msra.mxu0 0.0
    %636 = vmatpush.msra.mxu0 0.0
    %637 = vmatpush.msra.mxu0 0.0
    %638 = vmatpush.msra.mxu0 0.0
    %639 = vmatpush.msra.mxu0 0.0
    %640 = vmatpush.msra.mxu0 0.0
    %641 = vmatpush.msra.mxu0 0.0
    %642 = vmatpush.msra.mxu0 0.0
    %643 = vmatpush.msra.mxu0 0.0
    %644 = vmatpush.msra.mxu0 0.0
    %645 = vmatpush.msra.mxu0 0.0
    %646 = vmatpush.msra.mxu0 %v623
    %647 = vmatmul.f32.gmra.mxu0 %v626
    %v648 = vpop.f32.mrf.mxu0
    %v649 = vadd.f32 0.0, %v648
    %650 = vmatmul.f32.gmra.mxu0 %v629
    %v651 = vpop.f32.mrf.mxu0
    %v652 = vadd.f32 0.0, %v651
    %653 = vdwg.mxu0
    %v654 = vadd.f32 %v455, %v649
    %v655 = vadd.f32 %v458, %v652
    %656 = vrot.lane.b32.xlu0 %v68, 104
    %v657 = vpop.permute.xlu0 %656
    %658 = vrot.lane.b32.xlu0 %v68, 72
    %v659 = vpop.permute.xlu0 %658
    %v660 = vsel %vm76, %v657, 0
    %v662 = vsel %vm76, %v659, 0
    %664 = vmatpush.xpose.msra.mxu0 0.0
    %665 = vmatpush.xpose.msra.mxu0 0.0
    %666 = vmatpush.xpose.msra.mxu0 0.0
    %667 = vmatpush.xpose.msra.mxu0 0.0
    %668 = vmatpush.xpose.msra.mxu0 0.0
    %669 = vmatpush.xpose.msra.mxu0 0.0
    %670 = vmatpush.xpose.msra.mxu0 0.0
    %671 = vmatpush.xpose.msra.mxu0 0.0
    %672 = vmatpush.xpose.msra.mxu0 0.0
    %673 = vmatpush.xpose.msra.mxu0 0.0
    %674 = vmatpush.xpose.msra.mxu0 0.0
    %675 = vmatpush.xpose.msra.mxu0 0.0
    %676 = vmatpush.xpose.msra.mxu0 0.0
    %677 = vmatpush.xpose.msra.mxu0 0.0
    %678 = vmatpush.xpose.msra.mxu0 0.0
    %679 = vmatpush.xpose.msra.mxu0 %v662
    %680 = vmatmul.f32.gmra.mxu0 %v660
    %v681 = vpop.f32.mrf.mxu0
    %v682 = vadd.f32 0.0, %v681
    %683 = vdwg.mxu0
    %684 = vrot.lane.b32.xlu0 %v71, 104
    %v685 = vpop.permute.xlu0 %684
    %686 = vrot.lane.b32.xlu0 %v71, 72
    %v687 = vpop.permute.xlu0 %686
    %v688 = vsel %vm76, %v685, 0
    %v690 = vsel %vm76, %v687, 0
    %692 = vmatpush.xpose.msra.mxu0 0.0
    %693 = vmatpush.xpose.msra.mxu0 0.0
    %694 = vmatpush.xpose.msra.mxu0 0.0
    %695 = vmatpush.xpose.msra.mxu0 0.0
    %696 = vmatpush.xpose.msra.mxu0 0.0
    %697 = vmatpush.xpose.msra.mxu0 0.0
    %698 = vmatpush.xpose.msra.mxu0 0.0
    %699 = vmatpush.xpose.msra.mxu0 0.0
    %700 = vmatpush.xpose.msra.mxu0 0.0
    %701 = vmatpush.xpose.msra.mxu0 0.0
    %702 = vmatpush.xpose.msra.mxu0 0.0
    %703 = vmatpush.xpose.msra.mxu0 0.0
    %704 = vmatpush.xpose.msra.mxu0 0.0
    %705 = vmatpush.xpose.msra.mxu0 0.0
    %706 = vmatpush.xpose.msra.mxu0 0.0
    %707 = vmatpush.xpose.msra.mxu0 %v690
    %708 = vmatmul.f32.gmra.mxu0 %v688
    %v709 = vpop.f32.mrf.mxu0
    %v710 = vadd.f32 0.0, %v709
    %711 = vdwg.mxu0
    %v712 = vmul.f32 %v682, 0.35355338
    %v713 = vmul.f32 %v710, 0.35355338
    %v714 = vadd.f32 %v712, %v37
    %v715 = vadd.f32 %v713, %v38
    %v716 = vsel %vm76, %v714, -inf
    %717 = vmax.xlane.f32.xlu0 %v716
    %v718 = vpop.xlane.xlu0 %717
    %v719 = vsel %vm76, %v715, -inf
    %720 = vmax.xlane.f32.xlu0 %v719
    %v721 = vpop.xlane.xlu0 %720
    %v722 = vsub.f32 %v714, %v718
    %v723 = vsub.f32 %v715, %v721
    %v724 = vmul.f32 %v722, 1.442695
    %v725 = vpow.pop %v724
    %v726 = vmul.f32 %v723, 1.442695
    %v727 = vpow.pop %v726
    %v728 = vsel %vm76, %v725, 0.0
    %729 = vadd.xlane.f32.xlu0 %v728
    %v730 = vpop.xlane.xlu0 %729
    %v731 = vsel %vm76, %v727, 0.0
    %732 = vadd.xlane.f32.xlu0 %v731
    %v733 = vpop.xlane.xlu0 %732
    %v734 = vrcp.pop %v730
    %v735 = vmul.f32 %v730, %v734
    %v736 = vsub.f32 1.0, %v735
    %v737 = vmul.f32 %v734, %v736
    %v738 = vadd.f32 %v734, %v737
    %vm739 = vweird.f32 %v730
    %vm740 = vweird.f32 %v734
    %vm741 = vmor %vm739, %vm740
    %v742 = vsel %vm741, %v734, %v738
    %v743 = vand.u32 2147483647, %v730
    %vm744 = vcmp.eq.f32.partialorder %v743, 8.507059e+37
    %v745 = vand.u32 %v730, 2147483648
    %v746 = vor.u32 1.1754944e-38, %v745
    %v747 = vsel %vm744, %v746, %v742
    %v748 = vmul.f32 %v725, %v747
    %v749 = vrcp.pop %v733
    %v750 = vmul.f32 %v733, %v749
    %v751 = vsub.f32 1.0, %v750
    %v752 = vmul.f32 %v749, %v751
    %v753 = vadd.f32 %v749, %v752
    %vm754 = vweird.f32 %v733
    %vm755 = vweird.f32 %v749
    %vm756 = vmor %vm754, %vm755
    %v757 = vsel %vm756, %v749, %v753
    %v758 = vand.u32 2147483647, %v733
    %vm759 = vcmp.eq.f32.partialorder %v758, 8.507059e+37
    %v760 = vand.u32 %v733, 2147483648
    %v761 = vor.u32 1.1754944e-38, %v760
    %v762 = vsel %vm759, %v761, %v757
    %v763 = vmul.f32 %v727, %v762
    %764 = vrot.lane.b32.xlu0 %v68, 40
    %v765 = vpop.permute.xlu0 %764
    %v768 = vsel %vm76, %v748, 0
    %770 = vmatpush.msra.mxu0 0.0
    %771 = vmatpush.msra.mxu0 0.0
    %772 = vmatpush.msra.mxu0 0.0
    %773 = vmatpush.msra.mxu0 0.0
    %774 = vmatpush.msra.mxu0 0.0
    %775 = vmatpush.msra.mxu0 0.0
    %776 = vmatpush.msra.mxu0 0.0
    %777 = vmatpush.msra.mxu0 0.0
    %778 = vmatpush.msra.mxu0 0.0
    %779 = vmatpush.msra.mxu0 0.0
    %780 = vmatpush.msra.mxu0 0.0
    %781 = vmatpush.msra.mxu0 0.0
    %782 = vmatpush.msra.mxu0 0.0
    %783 = vmatpush.msra.mxu0 0.0
    %784 = vmatpush.msra.mxu0 0.0
    %785 = vmatpush.msra.mxu0 %v765
    %786 = vmatmul.f32.gmra.mxu0 %v768
    %v787 = vpop.f32.mrf.mxu0
    %v788 = vadd.f32 0.0, %v787
    %789 = vdwg.mxu0
    %790 = vrot.lane.b32.xlu0 %v71, 40
    %v791 = vpop.permute.xlu0 %790
    %v794 = vsel %vm76, %v763, 0
    %796 = vmatpush.msra.mxu0 0.0
    %797 = vmatpush.msra.mxu0 0.0
    %798 = vmatpush.msra.mxu0 0.0
    %799 = vmatpush.msra.mxu0 0.0
    %800 = vmatpush.msra.mxu0 0.0
    %801 = vmatpush.msra.mxu0 0.0
    %802 = vmatpush.msra.mxu0 0.0
    %803 = vmatpush.msra.mxu0 0.0
    %804 = vmatpush.msra.mxu0 0.0
    %805 = vmatpush.msra.mxu0 0.0
    %806 = vmatpush.msra.mxu0 0.0
    %807 = vmatpush.msra.mxu0 0.0
    %808 = vmatpush.msra.mxu0 0.0
    %809 = vmatpush.msra.mxu0 0.0
    %810 = vmatpush.msra.mxu0 0.0
    %811 = vmatpush.msra.mxu0 %v791
    %812 = vmatmul.f32.gmra.mxu0 %v794
    %v813 = vpop.f32.mrf.mxu0
    %v814 = vadd.f32 0.0, %v813
    %815 = vdwg.mxu0
    %v816 = vld [vmem:[%s2 + $0x30] sm:$0xff]
    %818 = vrot.lane.b32.xlu0 %v816, 32
    %v819 = vpop.permute.xlu0 %818
    %v822 = vsel %vm76, %v788, 0
    %v825 = vsel %vm76, %v814, 0
    %827 = vmatpush.msra.mxu0 0.0
    %828 = vmatpush.msra.mxu0 0.0
    %829 = vmatpush.msra.mxu0 0.0
    %830 = vmatpush.msra.mxu0 0.0
    %831 = vmatpush.msra.mxu0 0.0
    %832 = vmatpush.msra.mxu0 0.0
    %833 = vmatpush.msra.mxu0 0.0
    %834 = vmatpush.msra.mxu0 0.0
    %835 = vmatpush.msra.mxu0 0.0
    %836 = vmatpush.msra.mxu0 0.0
    %837 = vmatpush.msra.mxu0 0.0
    %838 = vmatpush.msra.mxu0 0.0
    %839 = vmatpush.msra.mxu0 0.0
    %840 = vmatpush.msra.mxu0 0.0
    %841 = vmatpush.msra.mxu0 0.0
    %842 = vmatpush.msra.mxu0 %v819
    %843 = vmatmul.f32.gmra.mxu0 %v822
    %v844 = vpop.f32.mrf.mxu0
    %v845 = vadd.f32 0.0, %v844
    %846 = vmatmul.f32.gmra.mxu0 %v825
    %v847 = vpop.f32.mrf.mxu0
    %v848 = vadd.f32 0.0, %v847
    %849 = vdwg.mxu0
    %v850 = vadd.f32 %v654, %v845
    %v851 = vadd.f32 %v655, %v848
    %v852 = vld [vmem:[%s4] sm:$0x1]
    %v853 = vld [vmem:[%s4 + $0x1] sm:$0x1]
    %v854 = vld [vmem:[%s4 + $0x2] sm:$0x1]
    %v855 = vld [vmem:[%s4 + $0x3] sm:$0x1]
    %v856 = vld [vmem:[%s4 + $0x4] sm:$0x1]
    %v857 = vld [vmem:[%s4 + $0x5] sm:$0x1]
    %v858 = vadd.f32 %v21, %v850
    %v859 = vadd.f32 %v22, %v851
    %v860 = vsel %vm43, %v858, 0.0
    %861 = vadd.xlane.f32.xlu0 %v860
    %v862 = vpop.xlane.xlu0 %861
    %v863 = vsel %vm43, %v859, 0.0
    %864 = vadd.xlane.f32.xlu0 %v863
    %v865 = vpop.xlane.xlu0 %864
    %v866 = vrcp.pop 32.0
    %v867 = vmul.f32 32.0, %v866
    %v868 = vsub.f32 1.0, %v867
    %v869 = vmul.f32 %v866, %v868
    %v870 = vadd.f32 %v866, %v869
    %vm871 = vweird.f32 %v866
    %v872 = vsel %vm871, %v866, %v870
    %v873 = vmul.f32 %v862, %v872
    %v874 = vmul.f32 %v865, %v872
    %v875 = vsub.f32 %v858, %v873
    %v876 = vsub.f32 %v859, %v874
    %v877 = vmul.f32 %v875, %v875
    %v878 = vmul.f32 %v876, %v876
    %v879 = vsel %vm43, %v877, 0.0
    %880 = vadd.xlane.f32.xlu0 %v879
    %v881 = vpop.xlane.xlu0 %880
    %v882 = vsel %vm43, %v878, 0.0
    %883 = vadd.xlane.f32.xlu0 %v882
    %v884 = vpop.xlane.xlu0 %883
    %v885 = vmul.f32 %v881, %v872
    %v886 = vmul.f32 %v884, %v872
    %v887 = vadd.f32 %v885, 1e-05
    %v888 = vadd.f32 %v886, 1e-05
    %v889 = vrsqrt.pop %v887
    %v890 = vmul.f32 %v889, %v887
    %v891 = vmul.f32 %v890, %v889
    %v892 = vmul.f32 0.5, %v891
    %v893 = vsub.f32 1.5, %v892
    %v894 = vmul.f32 %v889, %v893
    %vm895 = vweird.f32 %v887
    %vm896 = vweird.f32 %v889
    %vm897 = vmor %vm895, %vm896
    %v898 = vsel %vm897, %v889, %v894
    %v899 = vrsqrt.pop %v888
    %v900 = vmul.f32 %v899, %v888
    %v901 = vmul.f32 %v900, %v899
    %v902 = vmul.f32 0.5, %v901
    %v903 = vsub.f32 1.5, %v902
    %v904 = vmul.f32 %v899, %v903
    %vm905 = vweird.f32 %v888
    %vm906 = vweird.f32 %v899
    %vm907 = vmor %vm905, %vm906
    %v908 = vsel %vm907, %v899, %v904
    %v909 = vmul.f32 %v875, %v898
    %v910 = vmul.f32 %v876, %v908
    %v911 = vperm.slane %v852, 0
    %v912 = vmul.f32 %v909, %v911
    %v913 = vmul.f32 %v910, %v911
    %v914 = vperm.slane %v853, 0
    %v915 = vadd.f32 %v912, %v914
    %v916 = vadd.f32 %v913, %v914
    %v917 = vld [vmem:[%s2 + $0x8] sm:$0xff]
    %v918 = vld [vmem:[%s2 + $0x18] sm:$0xff]
    %v919 = vld [vmem:[%s2 + $0x28] sm:$0xff]
    %v920 = vld [vmem:[%s2 + $0x38] sm:$0xff]
    %v921 = vperm.slane %v854, 0
    %v923 = vsel %vm43, %v915, 0
    %v926 = vsel %vm43, %v916, 0
    %928 = vmatpush.msra.mxu0 0.0
    %929 = vmatpush.msra.mxu0 0.0
    %930 = vmatpush.msra.mxu0 0.0
    %931 = vmatpush.msra.mxu0 0.0
    %932 = vmatpush.msra.mxu0 0.0
    %933 = vmatpush.msra.mxu0 0.0
    %934 = vmatpush.msra.mxu0 0.0
    %935 = vmatpush.msra.mxu0 0.0
    %936 = vmatpush.msra.mxu0 0.0
    %937 = vmatpush.msra.mxu0 0.0
    %938 = vmatpush.msra.mxu0 0.0
    %939 = vmatpush.msra.mxu0 0.0
    %940 = vmatpush.msra.mxu0 %v920
    %941 = vmatpush.msra.mxu0 %v919
    %942 = vmatpush.msra.mxu0 %v918
    %943 = vmatpush.msra.mxu0 %v917
    %944 = vmatmul.f32.gmra.mxu0 %v923
    %v945 = vpop.f32.mrf.mxu0
    %v946 = vadd.f32 %v921, %v945
    %947 = vmatmul.f32.gmra.mxu0 %v926
    %v948 = vpop.f32.mrf.mxu0
    %v949 = vadd.f32 %v921, %v948
    %950 = vdwg.mxu0
    %v951 = vmax.f32 %v946, 0.0
    %v952 = vmax.f32 %v949, 0.0
    %v953 = vld [vmem:[%s3] sm:$0xff]
    %v954 = vld [vmem:[%s3 + $0x8] sm:$0xff]
    %v955 = vld [vmem:[%s3 + $0x10] sm:$0xff]
    %v956 = vld [vmem:[%s3 + $0x18] sm:$0xff]
    %v957 = vld [vmem:[%s3 + $0x20] sm:$0xff]
    %v958 = vld [vmem:[%s3 + $0x28] sm:$0xff]
    %v959 = vld [vmem:[%s3 + $0x30] sm:$0xff]
    %v960 = vld [vmem:[%s3 + $0x38] sm:$0xff]
    %v961 = vperm.slane %v855, 0
    %vm962 = vcmask 523264
    %v964 = vsel %vm962, %v951, 0
    %v967 = vsel %vm962, %v952, 0
    %969 = vmatpush.msra.mxu0 0.0
    %970 = vmatpush.msra.mxu0 0.0
    %971 = vmatpush.msra.mxu0 0.0
    %972 = vmatpush.msra.mxu0 0.0
    %973 = vmatpush.msra.mxu0 0.0
    %974 = vmatpush.msra.mxu0 0.0
    %975 = vmatpush.msra.mxu0 0.0
    %976 = vmatpush.msra.mxu0 0.0
    %977 = vmatpush.msra.mxu0 %v960
    %978 = vmatpush.msra.mxu0 %v959
    %979 = vmatpush.msra.mxu0 %v958
    %980 = vmatpush.msra.mxu0 %v957
    %981 = vmatpush.msra.mxu0 %v956
    %982 = vmatpush.msra.mxu0 %v955
    %983 = vmatpush.msra.mxu0 %v954
    %984 = vmatpush.msra.mxu0 %v953
    %985 = vmatmul.f32.gmra.mxu0 %v964
    %v986 = vpop.f32.mrf.mxu0
    %v987 = vadd.f32 %v961, %v986
    %988 = vmatmul.f32.gmra.mxu0 %v967
    %v989 = vpop.f32.mrf.mxu0
    %v990 = vadd.f32 %v961, %v989
    %991 = vdwg.mxu0
    %v992 = vadd.f32 %v915, %v987
    %v993 = vadd.f32 %v916, %v990
    %v994 = vsel %vm43, %v992, 0.0
    %995 = vadd.xlane.f32.xlu0 %v994
    %v996 = vpop.xlane.xlu0 %995
    %v997 = vsel %vm43, %v993, 0.0
    %998 = vadd.xlane.f32.xlu0 %v997
    %v999 = vpop.xlane.xlu0 %998
    %v1000 = vmul.f32 %v996, %v872
    %v1001 = vmul.f32 %v999, %v872
    %v1002 = vsub.f32 %v992, %v1000
    %v1003 = vsub.f32 %v993, %v1001
    %v1004 = vmul.f32 %v1002, %v1002
    %v1005 = vmul.f32 %v1003, %v1003
    %v1006 = vsel %vm43, %v1004, 0.0
    %1007 = vadd.xlane.f32.xlu0 %v1006
    %v1008 = vpop.xlane.xlu0 %1007
    %v1009 = vsel %vm43, %v1005, 0.0
    %1010 = vadd.xlane.f32.xlu0 %v1009
    %v1011 = vpop.xlane.xlu0 %1010
    %v1012 = vmul.f32 %v1008, %v872
    %v1013 = vmul.f32 %v1011, %v872
    %v1014 = vadd.f32 %v1012, 1e-05
    %v1015 = vadd.f32 %v1013, 1e-05
    %v1016 = vrsqrt.pop %v1014
    %v1017 = vmul.f32 %v1016, %v1014
    %v1018 = vmul.f32 %v1017, %v1016
    %v1019 = vmul.f32 0.5, %v1018
    %v1020 = vsub.f32 1.5, %v1019
    %v1021 = vmul.f32 %v1016, %v1020
    %vm1022 = vweird.f32 %v1014
    %vm1023 = vweird.f32 %v1016
    %vm1024 = vmor %vm1022, %vm1023
    %v1025 = vsel %vm1024, %v1016, %v1021
    %v1026 = vrsqrt.pop %v1015
    %v1027 = vmul.f32 %v1026, %v1015
    %v1028 = vmul.f32 %v1027, %v1026
    %v1029 = vmul.f32 0.5, %v1028
    %v1030 = vsub.f32 1.5, %v1029
    %v1031 = vmul.f32 %v1026, %v1030
    %vm1032 = vweird.f32 %v1015
    %vm1033 = vweird.f32 %v1026
    %vm1034 = vmor %vm1032, %vm1033
    %v1035 = vsel %vm1034, %v1026, %v1031
    %v1036 = vmul.f32 %v1002, %v1025
    %v1037 = vmul.f32 %v1003, %v1035
    %v1038 = vperm.slane %v856, 0
    %v1039 = vmul.f32 %v1036, %v1038
    %v1040 = vmul.f32 %v1037, %v1038
    %v1041 = vperm.slane %v857, 0
    %v1042 = vadd.f32 %v1039, %v1041
    %v1043 = vadd.f32 %v1040, %v1041
    %1044 = vst.msk [vmem:[#allocation2] sm:$0xff] %vm43, %v1042
    %1045 = vst.msk [vmem:[#allocation2 + $0x8] sm:$0xff] %vm43, %v1043
    // Predicated region
    $region22: #{tpu_custom_call.1} parent=1 // pred_check
      _
    $region23: #{tpu_custom_call.1} parent=1 // pred_check_branch
      %1047 = sbr.rel (0) target = $region25
    $region24: #{tpu_custom_call.1} parent=1 // pred_region
      %1049 = vsyncadd [#allocation3], 0
      %s1050 = sshll.u32 [#allocation2], 4
      %s1051 = int_to_ptr.vmem [resolvable:$true] %s1050
      %s1052 = sshll.u32 %s5, 4
      %s1053 = int_to_ptr.hbm [resolvable:$true] %s1052
      %1058 = dma.vmem_to_hbm [thread:$0]  %s1051, 256, %s1053, [#allocation3], 128, 128, 8
    $region25: #{tpu_custom_call.1} parent=1 // pred_fallthru
      _
    // Predicated region
    $region26: #{tpu_custom_call.1} parent=1 // pred_check
      _
    $region27: #{tpu_custom_call.1} parent=1 // pred_check_branch
      %1060 = sbr.rel (0) target = $region29
    $region28: #{tpu_custom_call.1} parent=1 // pred_region
      %1062 = dma.done [#allocation3], 256
    $region29: #{tpu_custom_call.1} parent=1 // pred_fallthru
      _
    %1063 = vsyncpa [#allocation3], 1

</llo_original>
